<compile_context>
chip_gen: v6e
topology: v6e:2x2x1
jax: 0.10.0
libtpu: 0.0.40
codegen_flags: <defaults>
</compile_context>

<pallas_src>
import jax
import jax.numpy as jnp
from jax.experimental import pallas as pl
from jax.experimental.pallas import tpu as pltpu

EPS = 1e-6  # matches the PyTorch module's self.eps = 1e-06


def _layernorm_kernel(x_ref, w_ref, b_ref, o_ref):
    # x_ref: (TB, C, HW) block; C is the sublane axis, HW the lane axis.
    x = x_ref[...].astype(jnp.float32)

    # mean / biased variance over the channel axis (axis=-2), keepdims.
    u = jnp.mean(x, axis=-2, keepdims=True)           # (TB, 1, HW)
    d = x - u
    s = jnp.mean(d * d, axis=-2, keepdims=True)       # (TB, 1, HW)

    # One rsqrt on the reduced slab (EUP slot, essentially free) + multiplies.
    r = jax.lax.rsqrt(s + EPS)                        # (TB, 1, HW)
    x_hat = d * r                                     # (TB, C, HW)

    w = w_ref[...].astype(jnp.float32)                # (C, 1): lane broadcast
    b = b_ref[...].astype(jnp.float32)                # (C, 1)

    o_ref[...] = (w * x_hat + b).astype(o_ref.dtype)


def _pick_batch_tile(B, C, HW, dtype_bytes, target_bytes=2 << 20):
    """Largest batch tile that divides B, keeps the block under ~2 MiB (safe
    for v7x's smaller VMEM with double-buffered in+out and f32 temps) and
    leaves >= 2 grid steps when B >= 2 (so both v7x TensorCores get work)."""
    per_batch = C * HW * dtype_bytes
    best = 1
    for tb in range(1, B + 1):
        if B % tb != 0:
            continue
        if tb * per_batch > target_bytes:
            break
        if B == 1 or (B // tb) >= 2:
            best = tb
    return best


def channel_layernorm(x, weight, bias):
    """x: (B, C, H, W); weight/bias: (1, C, 1, 1). Returns same shape/dtype as x."""
    B, C, H, W = x.shape
    assert weight.shape == (1, C, 1, 1) and bias.shape == (1, C, 1, 1)
    HW = H * W

    # Lane-dense layout: free contiguous reshape for NCHW.
    x3 = x.reshape(B, C, HW)
    w2 = weight.reshape(C, 1)
    b2 = bias.reshape(C, 1)

    itemsize = jnp.dtype(x.dtype).itemsize
    tb = _pick_batch_tile(B, C, HW, itemsize)
    grid = (B // tb,)

    # Advisory cost estimate: ~7 flops/elem, one rsqrt per (b, hw), in+out HBM traffic.
    cost = pl.CostEstimate(
        flops=7 * B * C * HW,
        transcendentals=B * HW,
        bytes_accessed=2 * B * C * HW * itemsize + 2 * C * jnp.dtype(weight.dtype).itemsize,
    )

    out3 = pl.pallas_call(
        _layernorm_kernel,
        out_shape=jax.ShapeDtypeStruct((B, C, HW), x.dtype),
        grid_spec=pltpu.PrefetchScalarGridSpec(
            num_scalar_prefetch=0,
            grid=grid,
            in_specs=[
                pl.BlockSpec((tb, C, HW), lambda i: (i, 0, 0)),
                pl.BlockSpec((C, 1), lambda i: (0, 0)),
                pl.BlockSpec((C, 1), lambda i: (0, 0)),
            ],
            out_specs=pl.BlockSpec((tb, C, HW), lambda i: (i, 0, 0)),
        ),
        compiler_params=pltpu.CompilerParams(
            dimension_semantics=("parallel",)),
        cost_estimate=cost,
    )(x3, w2, b2)

    return out3.reshape(B, C, H, W)


def _reference(x, weight, bias):
    x = x.astype(jnp.float32)
    u = jnp.mean(x, axis=1, keepdims=True)
    s = jnp.mean((x - u) ** 2, axis=1, keepdims=True)
    x_hat = (x - u) / jnp.sqrt(s + EPS)
    return weight * x_hat + bias


if __name__ == "__main__":
    # Shapes implied by the module defaults: shape=(1, 7, 1, 1) -> C = 7.
    B, C, H, W = 2, 7, 16, 16

    key = jax.random.PRNGKey(0)
    x = jax.random.normal(key, (B, C, H, W), dtype=jnp.float32)

    # Deterministic parameter init mirroring nn.Parameter(torch.ones/zeros).
    weight = jnp.ones((1, C, 1, 1), dtype=jnp.float32)
    bias = jnp.zeros((1, C, 1, 1), dtype=jnp.float32)

    out = channel_layernorm(x, weight, bias)
    out = jax.block_until_ready(out)

    ref = _reference(x, weight, bias)
    assert out.shape == x.shape and out.dtype == x.dtype
    assert jnp.allclose(out, ref, atol=1e-5, rtol=1e-5)

    print("KERNEL_OK")
</pallas_src>

<mosaic_0001>
module attributes {stable_mosaic.version = 11 : i64} {
  func.func @_layernorm_kernel(%arg0: i32, %arg1: memref<1x7x256xf32, #tpu.memory_space<vmem>>, %arg2: memref<7x1xf32, #tpu.memory_space<vmem>>, %arg3: memref<7x1xf32, #tpu.memory_space<vmem>>, %arg4: memref<1x7x256xf32, #tpu.memory_space<vmem>>) attributes {dimension_semantics = [#tpu.dimension_semantics<parallel>], iteration_bounds = array<i64: 2>, scalar_prefetch = 0 : i64, scratch_operands = 0 : i64, tpu.core_type = #tpu.core_type<tc>, window_params = [{transform_indices = @transform_0, window_bounds = array<i64: 1, 7, 256>}, {pipeline_mode = #tpu.pipeline_mode<synchronous>, transform_indices = @transform_1, window_bounds = array<i64: 7, 1>}, {pipeline_mode = #tpu.pipeline_mode<synchronous>, transform_indices = @transform_2, window_bounds = array<i64: 7, 1>}, {transform_indices = @transform_3, window_bounds = array<i64: 1, 7, 256>}]} {
    %c0 = arith.constant 0 : index
    %c0_0 = arith.constant 0 : index
    %c0_1 = arith.constant 0 : index
    %0 = vector.load %arg1[%c0, %c0_0, %c0_1] : memref<1x7x256xf32, #tpu.memory_space<vmem>>, vector<1x7x256xf32>
    %cst = arith.constant dense<0.000000e+00> : vector<1x256xf32>
    %1 = vector.multi_reduction <add>, %0, %cst [1] : vector<1x7x256xf32> to vector<1x256xf32>
    %2 = vector.shape_cast %1 : vector<1x256xf32> to vector<1x1x256xf32>
    %cst_2 = arith.constant 7.000000e+00 : f32
    %3 = vector.broadcast %cst_2 : f32 to vector<1x1x256xf32>
    %4 = arith.divf %2, %3 : vector<1x1x256xf32>
    %5 = vector.broadcast %4 : vector<1x1x256xf32> to vector<1x7x256xf32>
    %6 = arith.subf %0, %5 : vector<1x7x256xf32>
    %7 = arith.mulf %6, %6 : vector<1x7x256xf32>
    %cst_3 = arith.constant dense<0.000000e+00> : vector<1x256xf32>
    %8 = vector.multi_reduction <add>, %7, %cst_3 [1] : vector<1x7x256xf32> to vector<1x256xf32>
    %9 = vector.shape_cast %8 : vector<1x256xf32> to vector<1x1x256xf32>
    %cst_4 = arith.constant 7.000000e+00 : f32
    %10 = vector.broadcast %cst_4 : f32 to vector<1x1x256xf32>
    %11 = arith.divf %9, %10 : vector<1x1x256xf32>
    %cst_5 = arith.constant 9.99999997E-7 : f32
    %12 = vector.broadcast %cst_5 : f32 to vector<1x1x256xf32>
    %13 = arith.addf %11, %12 : vector<1x1x256xf32>
    %14 = math.rsqrt %13 : vector<1x1x256xf32>
    %15 = vector.broadcast %14 : vector<1x1x256xf32> to vector<1x7x256xf32>
    %16 = arith.mulf %6, %15 : vector<1x7x256xf32>
    %c0_6 = arith.constant 0 : index
    %c0_7 = arith.constant 0 : index
    %17 = vector.load %arg2[%c0_6, %c0_7] : memref<7x1xf32, #tpu.memory_space<vmem>>, vector<7x1xf32>
    %c0_8 = arith.constant 0 : index
    %c0_9 = arith.constant 0 : index
    %18 = vector.load %arg3[%c0_8, %c0_9] : memref<7x1xf32, #tpu.memory_space<vmem>>, vector<7x1xf32>
    %19 = vector.shape_cast %17 : vector<7x1xf32> to vector<1x7x1xf32>
    %20 = vector.broadcast %19 : vector<1x7x1xf32> to vector<1x7x256xf32>
    %21 = arith.mulf %20, %16 : vector<1x7x256xf32>
    %22 = vector.shape_cast %18 : vector<7x1xf32> to vector<1x7x1xf32>
    %23 = vector.broadcast %22 : vector<1x7x1xf32> to vector<1x7x256xf32>
    %24 = arith.addf %21, %23 : vector<1x7x256xf32>
    %c0_10 = arith.constant 0 : index
    %c0_11 = arith.constant 0 : index
    %c0_12 = arith.constant 0 : index
    %25 = vector.load %arg4[%c0_10, %c0_11, %c0_12] : memref<1x7x256xf32, #tpu.memory_space<vmem>>, vector<1x7x256xf32>
    tpu.vector_store %arg4[%c0_10, %c0_11, %c0_12], %24 {strides = array<i32>} : memref<1x7x256xf32, #tpu.memory_space<vmem>>, vector<1x7x256xf32>,
    return
  }
  func.func @transform_0(%arg0: i32) -> (i32, i32, i32) {
    %c0_i32 = arith.constant 0 : i32
    %c0_i32_0 = arith.constant 0 : i32
    %c0_i32_1 = arith.constant 0 : i32
    return %arg0, %c0_i32, %c0_i32_0 : i32, i32, i32
  }
  func.func @transform_1(%arg0: i32) -> (i32, i32) {
    %c0_i32 = arith.constant 0 : i32
    %c0_i32_0 = arith.constant 0 : i32
    %c0_i32_1 = arith.constant 0 : i32
    return %c0_i32, %c0_i32_0 : i32, i32
  }
  func.func @transform_2(%arg0: i32) -> (i32, i32) {
    %c0_i32 = arith.constant 0 : i32
    %c0_i32_0 = arith.constant 0 : i32
    %c0_i32_1 = arith.constant 0 : i32
    return %c0_i32, %c0_i32_0 : i32, i32
  }
  func.func @transform_3(%arg0: i32) -> (i32, i32, i32) {
    %c0_i32 = arith.constant 0 : i32
    %c0_i32_0 = arith.constant 0 : i32
    %c0_i32_1 = arith.constant 0 : i32
    return %arg0, %c0_i32, %c0_i32_0 : i32, i32, i32
  }
}

</mosaic_0001>

<llo_original>
// kernel: tpu_custom_call.1
$region0: #{tpu_custom_call.1}
  #allocation0 [shape = 'u32[]', space=smem, size = 0x4, offset = 0x4, fixed_abs, tag = 'smem constant byte address 0x4 - core index']
  #allocation1 [shape = 'u32[144,128]{1,0:T(1,128)}', space=vmem, size = 0x12000, scoped, tag = 'internal scratch']
  %s0 = inlined_call_operand.vmem [shape: f32[2,7,256], index: 0, kind: input, shape index: {}]
  %s1 = inlined_call_operand.vmem [shape: f32[7,1], index: 1, kind: input, shape index: {}]
  %s2 = inlined_call_operand.vmem [shape: f32[7,1], index: 2, kind: input, shape index: {}]
  %s3 = inlined_call_operand.vmem [shape: f32[2,7,256], index: 3, kind: output, shape index: {}]
  %s4 = sld [smem:[#allocation0]]
  $region45: #{tpu_custom_call.1} parent=0
    _
  %s6 = ssub.s32 1, %s4
  %s7 = scalar_select 0, %s6, %s4
  loop: start=0, step=1, limit=4
  $region2: #{tpu_custom_call.1} parent=0 // loop_pre_header
    _
  $region3: #{tpu_custom_call.1} parent=0 // loop_header
    %s9 = sphi 0, %s13
    %p10 = scmp.ge.s32.totalorder %s9, 4
    %s19 = sphi 0, %s21
    %s22 = sphi 0, %s19
    %s23 = sphi 0, %s22
    %s39 = sphi 0, %s23
    %s43 = sphi 0, %s43
    %s45 = sphi 0, %s43
    %s46 = sphi 0, %s45
    %s60 = sphi 0, %s46
    %s64 = sphi 0, %s64
    %s66 = sphi 0, %s64
    %s67 = sphi 0, %s66
    %s81 = sphi 0, %s67
    %s87 = sphi 0, %s89
    %s90 = sphi 0, %s87
    %s91 = sphi 0, %s90
    %s107 = sphi 0, %s91
  $region4: #{tpu_custom_call.1} parent=0 // loop_header_branch
    %12 = sbr.rel (%p10) target = $region8
  $region5: #{tpu_custom_call.1} parent=0 // loop_body
    %s14 = ssub.s32 %s9, 1
    %s15 = ssub.s32 %s9, 2
    %s16 = sadd.s32 %s9, 1
    %s17 = ssub.s32 %s9, %s16
    %p18 = scmp.eq.s32.totalorder %s17, 0
    %s20 = sadd.s32 %s19, 1
    %s21 = scalar_select %p18, %s19, %s20
    %p24 = pneg %p18
    %p25 = scmp.eq.s32.totalorder %s9, 1
    %p26 = por %p24, %p25
    %p27 = scmp.ne.s32.totalorder %s19, %s22
    %p28 = scmp.eq.s32.totalorder %s9, 0
    %p29 = por %p27, %p28
    %p30 = scmp.ne.s32.totalorder %s19, %s22
    %p31 = scmp.eq.s32.totalorder %s14, 1
    %p32 = por %p30, %p31
    %p33 = scmp.ne.s32.totalorder %s22, %s23
    %p34 = scmp.eq.s32.totalorder %s14, 0
    %p35 = por %p33, %p34
    %p36 = scmp.ne.s32.totalorder %s22, %s23
    %p37 = scmp.eq.s32.totalorder %s15, 1
    %p38 = por %p36, %p37
    %p40 = scmp.ne.s32.totalorder %s23, %s39
    %p41 = scmp.eq.s32.totalorder %s15, 0
    %p42 = por %p40, %p41
    %s44 = sadd.s32 %s43, 1
    %p47 = scmp.eq.s32.totalorder %s9, 1
    %p48 = scmp.ne.s32.totalorder %s43, %s45
    %p49 = scmp.eq.s32.totalorder %s9, 0
    %p50 = por %p48, %p49
    %p51 = scmp.ne.s32.totalorder %s43, %s45
    %p52 = scmp.eq.s32.totalorder %s14, 1
    %p53 = por %p51, %p52
    %p54 = scmp.ne.s32.totalorder %s45, %s46
    %p55 = scmp.eq.s32.totalorder %s14, 0
    %p56 = por %p54, %p55
    %p57 = scmp.ne.s32.totalorder %s45, %s46
    %p58 = scmp.eq.s32.totalorder %s15, 1
    %p59 = por %p57, %p58
    %p61 = scmp.ne.s32.totalorder %s46, %s60
    %p62 = scmp.eq.s32.totalorder %s15, 0
    %p63 = por %p61, %p62
    %s65 = sadd.s32 %s64, 1
    %p68 = scmp.eq.s32.totalorder %s9, 1
    %p69 = scmp.ne.s32.totalorder %s64, %s66
    %p70 = scmp.eq.s32.totalorder %s9, 0
    %p71 = por %p69, %p70
    %p72 = scmp.ne.s32.totalorder %s64, %s66
    %p73 = scmp.eq.s32.totalorder %s14, 1
    %p74 = por %p72, %p73
    %p75 = scmp.ne.s32.totalorder %s66, %s67
    %p76 = scmp.eq.s32.totalorder %s14, 0
    %p77 = por %p75, %p76
    %p78 = scmp.ne.s32.totalorder %s66, %s67
    %p79 = scmp.eq.s32.totalorder %s15, 1
    %p80 = por %p78, %p79
    %p82 = scmp.ne.s32.totalorder %s67, %s81
    %p83 = scmp.eq.s32.totalorder %s15, 0
    %p84 = por %p82, %p83
    %s85 = ssub.s32 %s9, %s16
    %p86 = scmp.eq.s32.totalorder %s85, 0
    %s88 = sadd.s32 %s87, 1
    %s89 = scalar_select %p86, %s87, %s88
    %p92 = pneg %p86
    %p93 = scmp.eq.s32.totalorder %s9, 1
    %p94 = por %p92, %p93
    %p95 = scmp.ne.s32.totalorder %s87, %s90
    %p96 = scmp.eq.s32.totalorder %s9, 0
    %p97 = por %p95, %p96
    %p98 = scmp.ne.s32.totalorder %s87, %s90
    %p99 = scmp.eq.s32.totalorder %s14, 1
    %p100 = por %p98, %p99
    %p101 = scmp.ne.s32.totalorder %s90, %s91
    %p102 = scmp.eq.s32.totalorder %s14, 0
    %p103 = por %p101, %p102
    %p104 = scmp.ne.s32.totalorder %s90, %s91
    %p105 = scmp.eq.s32.totalorder %s15, 1
    %p106 = por %p104, %p105
    %p108 = scmp.ne.s32.totalorder %s91, %s107
    %p109 = scmp.eq.s32.totalorder %s15, 0
    %p110 = por %p108, %p109
    %p111 = scmp.le.s32.totalorder 1, %s9
    %p112 = scmp.lt.s32.totalorder %s9, 3
    %p113 = pnand %p111, %p112
    %p114 = pneg %p113
    // Predicated region
    $region9: #{tpu_custom_call.1} parent=5 // pred_check
      _
    $region10: #{tpu_custom_call.1} parent=5 // pred_check_branch
      %116 = sbr.rel (%p113) target = $region12
    $region11: #{tpu_custom_call.1} parent=5 // pred_region
      %s117 = ssub.s32 %s9, 1
      // Predicated region
      $region13: #{tpu_custom_call.1} parent=11 // pred_check
        %p118 = pneg %p56
      $region14: #{tpu_custom_call.1} parent=11 // pred_check_branch
        %120 = sbr.rel (%p118) target = $region16
      $region15: #{tpu_custom_call.1} parent=11 // pred_region
        _
      $region16: #{tpu_custom_call.1} parent=11 // pred_fallthru
        _
      // Predicated region
      $region17: #{tpu_custom_call.1} parent=11 // pred_check
        %p121 = pneg %p77
      $region18: #{tpu_custom_call.1} parent=11 // pred_check_branch
        %123 = sbr.rel (%p121) target = $region20
      $region19: #{tpu_custom_call.1} parent=11 // pred_region
        _
      $region20: #{tpu_custom_call.1} parent=11 // pred_fallthru
        _
    $region12: #{tpu_custom_call.1} parent=5 // pred_fallthru
      _
    %p124 = scmp.lt.s32.totalorder %s9, 2
    // Predicated region
    $region21: #{tpu_custom_call.1} parent=5 // pred_check
      %p125 = pneg %p124
    $region22: #{tpu_custom_call.1} parent=5 // pred_check_branch
      %127 = sbr.rel (%p125) target = $region24
    $region23: #{tpu_custom_call.1} parent=5 // pred_region
      // Predicated region
      $region25: #{tpu_custom_call.1} parent=23 // pred_check
        %p128 = pneg %p29
      $region26: #{tpu_custom_call.1} parent=23 // pred_check_branch
        %130 = sbr.rel (%p128) target = $region28
      $region27: #{tpu_custom_call.1} parent=23 // pred_region
        %p131 = scmp.lt.s32.totalorder %s9, 1
        %s132 = scalar_select %p131, %s9, 1
        %s133 = smul.addr %s132, 2
        %s134 = smul.addr %s133, 8
        %s135 = scalar_lea.vmem %s0, %s134
      $region28: #{tpu_custom_call.1} parent=23 // pred_fallthru
        _
    $region24: #{tpu_custom_call.1} parent=5 // pred_fallthru
      _
    %p136 = scmp.le.s32.totalorder 1, %s9
    %p137 = scmp.lt.s32.totalorder %s9, 3
    %p138 = pnand %p136, %p137
    %p139 = pneg %p138
    // Predicated region
    $region29: #{tpu_custom_call.1} parent=5 // pred_check
      _
    $region30: #{tpu_custom_call.1} parent=5 // pred_check_branch
      %141 = sbr.rel (%p138) target = $region32
    $region31: #{tpu_custom_call.1} parent=5 // pred_region
      %s142 = ssub.s32 %s9, 1
      %p143 = scmp.lt.s32.totalorder %s14, 1
      %s144 = scalar_select %p143, %s14, 1
      %s145 = smul.addr %s144, 2
      %s146 = smul.addr %s145, 8
      %s147 = scalar_lea.vmem %s0, %s146
      %p148 = pneg %p35
      %p149 = pneg %p32
      %p150 = pneg %p56
      %p151 = pneg %p53
      %p152 = pneg %p77
      %p153 = pneg %p74
      %p154 = pneg %p103
      %p155 = pneg %p100
      %p156 = scmp.lt.s32.totalorder %s14, 1
      %s157 = scalar_select %p156, %s14, 1
      %s158 = smul.addr %s157, 2
      %s159 = smul.addr %s158, 8
      %s160 = scalar_lea.vmem %s3, %s159
      %p161 = scmp.lt.s32.totalorder %s14, 1
      %s162 = scalar_select %p161, %s14, 1
      %s163 = smul.addr %s162, 2
      %s164 = smul.addr %s163, 8
      %s165 = scalar_lea.vmem %s0, %s164
      %p166 = scmp.lt.s32.totalorder %s14, 1
      %s167 = scalar_select %p166, %s14, 1
      %s168 = smul.addr %s167, 2
      %s169 = smul.addr %s168, 8
      %s170 = scalar_lea.vmem %s3, %s169
      %v171 = vld [vmem:[%s165] sm:$0x7f]
      %v172 = vld [vmem:[%s165 + $0x8] sm:$0x7f]
      %vm173 = vcmask 1046528
      %v174 = vsel %vm173, %v171, 0.0
      %v175 = vrot.slane %v174, 4
      %v176 = vadd.f32 %v174, %v175
      %v177 = vrot.slane %v176, 2
      %v178 = vadd.f32 %v176, %v177
      %v179 = vrot.slane %v178, 1
      %v180 = vadd.f32 %v178, %v179
      %v181 = vsel %vm173, %v172, 0.0
      %v182 = vrot.slane %v181, 4
      %v183 = vadd.f32 %v181, %v182
      %v184 = vrot.slane %v183, 2
      %v185 = vadd.f32 %v183, %v184
      %v186 = vrot.slane %v185, 1
      %v187 = vadd.f32 %v185, %v186
      %v188 = vrcp.pop 7.0
      %v189 = vmul.f32 %v180, %v188
      %v190 = vmul.f32 %v187, %v188
      %v191 = vsub.f32 %v171, %v189
      %v192 = vsub.f32 %v172, %v190
      %v193 = vmul.f32 %v191, %v191
      %v194 = vmul.f32 %v192, %v192
      %v195 = vsel %vm173, %v193, 0.0
      %v196 = vrot.slane %v195, 4
      %v197 = vadd.f32 %v195, %v196
      %v198 = vrot.slane %v197, 2
      %v199 = vadd.f32 %v197, %v198
      %v200 = vrot.slane %v199, 1
      %v201 = vadd.f32 %v199, %v200
      %v202 = vsel %vm173, %v194, 0.0
      %v203 = vrot.slane %v202, 4
      %v204 = vadd.f32 %v202, %v203
      %v205 = vrot.slane %v204, 2
      %v206 = vadd.f32 %v204, %v205
      %v207 = vrot.slane %v206, 1
      %v208 = vadd.f32 %v206, %v207
      %v209 = vmul.f32 %v201, %v188
      %v210 = vmul.f32 %v208, %v188
      %v211 = vadd.f32 %v209, 1e-06
      %v212 = vadd.f32 %v210, 1e-06
      %v213 = vrsqrt.pop %v211
      %v214 = vrsqrt.pop %v212
      %v215 = vmul.f32 %v191, %v213
      %v216 = vmul.f32 %v192, %v214
      %v217 = vld [vmem:[%s1] sm:$0x7f]
      %v218 = vld [vmem:[%s2] sm:$0x7f]
      %220 = vset.pattern.permute.xlu0 0
      %221 = vperm.xlu0 %220, %v217
      %v222 = vpop.permute.xlu0 %221
      %v224 = vmul.f32 %v222, %v215
      %v225 = vmul.f32 %v222, %v216
      %227 = vset.pattern.permute.xlu0 0
      %228 = vperm.xlu0 %227, %v218
      %v229 = vpop.permute.xlu0 %228
      %v231 = vadd.f32 %v224, %v229
      %v232 = vadd.f32 %v225, %v229
      %233 = vst [vmem:[%s170] sm:$0x7f] %v231
      %234 = vst [vmem:[%s170 + $0x8] sm:$0x7f] %v232
      %p235 = scmp.lt.s32.totalorder %s14, 1
      %s236 = scalar_select %p235, %s14, 1
      %s237 = smul.addr %s236, 2
      %s238 = smul.addr %s237, 8
      %s239 = scalar_lea.vmem %s3, %s238
      // Predicated region
      $region33: #{tpu_custom_call.1} parent=31 // pred_check
        %p240 = pneg %p100
      $region34: #{tpu_custom_call.1} parent=31 // pred_check_branch
        %242 = sbr.rel (%p240) target = $region36
      $region35: #{tpu_custom_call.1} parent=31 // pred_region
        _
      $region36: #{tpu_custom_call.1} parent=31 // pred_fallthru
        _
    $region32: #{tpu_custom_call.1} parent=5 // pred_fallthru
      _
    %p243 = scmp.le.s32.totalorder 2, %s9
    // Predicated region
    $region37: #{tpu_custom_call.1} parent=5 // pred_check
      %p244 = pneg %p243
    $region38: #{tpu_custom_call.1} parent=5 // pred_check_branch
      %246 = sbr.rel (%p244) target = $region40
    $region39: #{tpu_custom_call.1} parent=5 // pred_region
      %s247 = ssub.s32 %s9, 2
      // Predicated region
      $region41: #{tpu_custom_call.1} parent=39 // pred_check
        %p248 = pneg %p106
      $region42: #{tpu_custom_call.1} parent=39 // pred_check_branch
        %250 = sbr.rel (%p248) target = $region44
      $region43: #{tpu_custom_call.1} parent=39 // pred_region
        %p251 = scmp.lt.s32.totalorder %s15, 1
        %s252 = scalar_select %p251, %s15, 1
        %s253 = smul.addr %s252, 2
        %s254 = smul.addr %s253, 8
        %s255 = scalar_lea.vmem %s3, %s254
      $region44: #{tpu_custom_call.1} parent=39 // pred_fallthru
        _
    $region40: #{tpu_custom_call.1} parent=5 // pred_fallthru
      _
  $region6: #{tpu_custom_call.1} parent=0 // loop_footer
    %s13 = sadd.s32 1, %s9
  $region7: #{tpu_custom_call.1} parent=0 // loop_footer_branch
    %8 = sbr.rel target = $region3
  $region8: #{tpu_custom_call.1} parent=0 // loop_exit
    _

</llo_original>
